<compile_context>
chip_gen: v5e
topology: v5e:2x2
jax: 0.10.0
libtpu: 0.0.40
codegen_flags: <defaults>
</compile_context>

<pallas_src>
import numpy as np
import jax
import jax.numpy as jnp
from jax.experimental import pallas as pl
from jax.experimental.pallas import tpu as pltpu


# ----------------------------------------------------------------------------
# Pallas kernel: folded GEMV for one batch tile.
# ----------------------------------------------------------------------------
def _post_decoder_gemv_kernel(x_ref, w_ref, c_ref, o_ref):
    # x_ref : (TB, K)  activations, lane-dense (K = num_var*in_dim on lanes)
    # w_ref : (1, K)   folded effective weight row (resident in VMEM)
    # c_ref : (1,)     folded bias constant (SMEM scalar)
    # o_ref : (TB, 1)
    prod = x_ref[...] * w_ref[...]                   # VPU, sublane-broadcast of w
    acc = jnp.sum(prod, axis=1, keepdims=True)       # XLU lane reduce -> (TB, 1)
    o_ref[...] = (acc + c_ref[0]).astype(o_ref.dtype)


def _round_up(a, b):
    return -(-a // b) * b


# ----------------------------------------------------------------------------
# Wrapper: algebraic fold + layout glue + pallas_call.
# ----------------------------------------------------------------------------
def post_decoder(x, proj_w, proj_b, lin_w, lin_b):
    """Post_Decoder.forward.

    x      : (B, num_var, in_dim) float   (num_var=None branch: pass (B, in_dim))
    proj_w : (out_dim, in_dim)   -- PyTorch nn.Linear weight layout
    proj_b : (out_dim,)
    lin_w  : (1, num_var * out_dim)       (or (1, out_dim) if num_var is None)
    lin_b  : (1,)
    returns: (B, 1) float32
    """
    if x.ndim == 2:                       # num_var=None branch of the PyTorch module
        x = x[:, None, :]
    B, V, Din = x.shape
    Dout = proj_w.shape[0]
    K = V * Din
    f32 = jnp.float32

    # --- fold proj -> view -> linear into one GEMV (wrapper-side, O(V*Dout*Din)) ---
    lin_w_r = lin_w.reshape(V, Dout).astype(f32)                     # (V, Dout)
    w_eff = jnp.einsum("vo,od->vd", lin_w_r, proj_w.astype(f32))     # (V, Din)
    w_row = w_eff.reshape(1, K)                                      # (1, K)
    const = (jnp.einsum("vo,o->", lin_w_r, proj_b.astype(f32))
             + lin_b.astype(f32).reshape(())).reshape(1)             # (1,) scalar

    # --- lane-dense activation slab + batch tiling ---------------------------
    x2d = x.reshape(B, K).astype(f32)                                # (B, K)

    SUB, LANE = 8, 128
    k_lanes = _round_up(K, LANE)
    b_ceil = _round_up(B, SUB)
    # ~1 MiB of x per pipeline buffer (+ the lane-padded (TB,1) output tile).
    row_bytes = (k_lanes + LANE) * 4
    tb = max(SUB, ((2 * 1024 * 1024) // row_bytes) // SUB * SUB)
    tb = min(tb, b_ceil)
    # Prefer >= 2 grid steps so "parallel" can shard across v7x's two
    # TensorCores (one extra, cheap step on single-TC v5e/v6e).
    if _round_up(B, tb) // tb == 1 and b_ceil > SUB:
        tb = max(SUB, _round_up(b_ceil // 2, SUB))
    b_pad = _round_up(B, tb)
    if b_pad != B:
        x2d = jnp.pad(x2d, ((0, b_pad - B), (0, 0)))                 # zero rows, sliced off below

    grid = (b_pad // tb,)
    out = pl.pallas_call(
        _post_decoder_gemv_kernel,
        out_shape=jax.ShapeDtypeStruct((b_pad, 1), f32),
        grid_spec=pltpu.PrefetchScalarGridSpec(
            num_scalar_prefetch=0,
            grid=grid,
            in_specs=[
                pl.BlockSpec((tb, K), lambda i: (i, 0)),                  # x: tiled over batch
                pl.BlockSpec((1, K), lambda i: (0, 0)),                   # folded weights (resident)
                pl.BlockSpec(memory_space=pltpu.MemorySpace.SMEM),        # folded bias (SMEM scalar)
            ],
            out_specs=pl.BlockSpec((tb, 1), lambda i: (i, 0)),
        ),
        compiler_params=pltpu.CompilerParams(
            dimension_semantics=("parallel",),       # batch tiles are independent
            vmem_limit_bytes=32 * 1024 * 1024),
    )(x2d, w_row, const)

    return out[:B]


# ----------------------------------------------------------------------------
# Demo / self-test
# ----------------------------------------------------------------------------
if __name__ == "__main__":
    B, V, Din, Dout = 2, 16, 8, 4        # batch=2, num_var=16, in_dim=8, out_dim=4

    key = jax.random.PRNGKey(0)
    k1, k2, k3, k4, k5 = jax.random.split(key, 5)
    x = jax.random.normal(k1, (B, V, Din), dtype=jnp.float32)
    proj_w = 0.1 * jax.random.normal(k2, (Dout, Din), dtype=jnp.float32)
    proj_b = 0.1 * jax.random.normal(k3, (Dout,), dtype=jnp.float32)
    lin_w = 0.1 * jax.random.normal(k4, (1, V * Dout), dtype=jnp.float32)
    lin_b = 0.1 * jax.random.normal(k5, (1,), dtype=jnp.float32)

    out = post_decoder(x, proj_w, proj_b, lin_w, lin_b)
    out = jax.block_until_ready(out)
    assert out.shape == (B, 1)

    # Pure-numpy reference mirroring the PyTorch forward exactly.
    xn, pwn, pbn = np.asarray(x), np.asarray(proj_w), np.asarray(proj_b)
    lwn, lbn = np.asarray(lin_w), np.asarray(lin_b)
    y_ref = np.einsum("bvd,od->bvo", xn, pwn) + pbn          # proj
    ref = y_ref.reshape(B, -1) @ lwn.T + lbn                 # view + linear
    np.testing.assert_allclose(np.asarray(out), ref, rtol=1e-4, atol=1e-4)

    print("KERNEL_OK")
</pallas_src>

<mosaic_0001>
module attributes {stable_mosaic.version = 11 : i64} {
  func.func @_post_decoder_gemv_kernel(%arg0: i32, %arg1: memref<8x128xf32, #tpu.memory_space<vmem>>, %arg2: memref<1x128xf32, #tpu.memory_space<vmem>>, %arg3: memref<1xf32, #tpu.memory_space<smem>>, %arg4: memref<8x1xf32, #tpu.memory_space<vmem>>) attributes {dimension_semantics = [#tpu.dimension_semantics<parallel>], iteration_bounds = array<i64: 1>, scalar_prefetch = 0 : i64, scratch_operands = 0 : i64, tpu.core_type = #tpu.core_type<tc>, window_params = [{transform_indices = @transform_0, window_bounds = array<i64: 8, 128>}, {pipeline_mode = #tpu.pipeline_mode<synchronous>, transform_indices = @transform_1, window_bounds = array<i64: 1, 128>}, {transform_indices = @transform_2, window_bounds = array<i64: 1>}, {transform_indices = @transform_3, window_bounds = array<i64: 8, 1>}]} {
    %c0 = arith.constant 0 : index
    %c0_0 = arith.constant 0 : index
    %0 = vector.load %arg1[%c0, %c0_0] : memref<8x128xf32, #tpu.memory_space<vmem>>, vector<8x128xf32>
    %c0_1 = arith.constant 0 : index
    %c0_2 = arith.constant 0 : index
    %1 = vector.load %arg2[%c0_1, %c0_2] : memref<1x128xf32, #tpu.memory_space<vmem>>, vector<1x128xf32>
    %2 = vector.broadcast %1 : vector<1x128xf32> to vector<8x128xf32>
    %3 = arith.mulf %0, %2 : vector<8x128xf32>
    %cst = arith.constant dense<0.000000e+00> : vector<8xf32>
    %4 = vector.multi_reduction <add>, %3, %cst [1] : vector<8x128xf32> to vector<8xf32>
    %5 = vector.shape_cast %4 : vector<8xf32> to vector<8x1xf32>
    %c0_3 = arith.constant 0 : index
    %6 = memref.load %arg3[%c0_3] : memref<1xf32, #tpu.memory_space<smem>>
    %7 = vector.broadcast %6 : f32 to vector<8x1xf32>
    %8 = arith.addf %5, %7 : vector<8x1xf32>
    %c0_4 = arith.constant 0 : index
    %c0_5 = arith.constant 0 : index
    %9 = vector.load %arg4[%c0_4, %c0_5] : memref<8x1xf32, #tpu.memory_space<vmem>>, vector<8x1xf32>
    tpu.vector_store %arg4[%c0_4, %c0_5], %8 {strides = array<i32>} : memref<8x1xf32, #tpu.memory_space<vmem>>, vector<8x1xf32>,
    return
  }
  func.func @transform_0(%arg0: i32) -> (i32, i32) {
    %c0_i32 = arith.constant 0 : i32
    %c0_i32_0 = arith.constant 0 : i32
    return %arg0, %c0_i32 : i32, i32
  }
  func.func @transform_1(%arg0: i32) -> (i32, i32) {
    %c0_i32 = arith.constant 0 : i32
    %c0_i32_0 = arith.constant 0 : i32
    %c0_i32_1 = arith.constant 0 : i32
    return %c0_i32, %c0_i32_0 : i32, i32
  }
  func.func @transform_2(%arg0: i32) -> i32 {
    %c0_i32 = arith.constant 0 : i32
    %c0_i32_0 = arith.constant 0 : i32
    return %c0_i32 : i32
  }
  func.func @transform_3(%arg0: i32) -> (i32, i32) {
    %c0_i32 = arith.constant 0 : i32
    %c0_i32_0 = arith.constant 0 : i32
    return %arg0, %c0_i32 : i32, i32
  }
}

</mosaic_0001>

<llo_original>
// kernel: tpu_custom_call.1
$region0: #{tpu_custom_call.1}
  #allocation0 [shape = 'u32[]', space=smem, size = 0x4, offset = 0x4, fixed_abs, tag = 'smem constant byte address 0x4 - core index']
  #allocation1 [shape = 'u32[72,128]{1,0:T(1,128)}', space=vmem, size = 0x9000, scoped, tag = 'internal scratch']
  #allocation2 [shape = 'f32[1]{0:T(128)S(6)}', space=smem, size = 0x200, scoped, tag = 'scoped memory for tpu_custom_call.1']
  %s0 = inlined_call_operand.hbm [shape: f32[8,128], index: 0, kind: input, shape index: {}]
  %s1 = inlined_call_operand.vmem [shape: f32[1,128], index: 1, kind: input, shape index: {}]
  %s2 = inlined_call_operand.<no memory space> [shape: f32[1], index: 2, kind: input, shape index: {}]
  %s3 = inlined_call_operand.vmem [shape: f32[8,1], index: 3, kind: output, shape index: {}]
  %s4 = sld [smem:[#allocation0]]
  $region26: #{tpu_custom_call.1} parent=0
    _
  %s6 = ssub.s32 1, %s4
  %s7 = scalar_select 0, %s6, %s4
  %8 = sst [smem:[#allocation2]] %s2
  $region1: #{tpu_custom_call.1} parent=0
    #allocation3 [shape = 'u8[4096]{0}', space=vmem, size = 0x1000, scoped, tag = 'input window, operand 0, single buffered']
    #allocation4 [shape = 's32[1]{0}', space=sflag, size = 0x4, scoped, tag = 'scoped memory for tpu_custom_call.1']
    %9 = vsyncpa [#allocation4], 0
    // Predicated region
    $region2: #{tpu_custom_call.1} parent=1 // pred_check
      _
    $region3: #{tpu_custom_call.1} parent=1 // pred_check_branch
      %11 = sbr.rel (0) target = $region5
    $region4: #{tpu_custom_call.1} parent=1 // pred_region
      %13 = vsyncadd [#allocation4], 0
      %s15 = sshll.u32 %s0, 4
      %s16 = int_to_ptr.hbm [resolvable:$true] %s15
      %s17 = sshll.u32 [#allocation3], 4
      %s18 = int_to_ptr.vmem [resolvable:$true] %s17
      %20 = dma.hbm_to_vmem [thread:$0]  %s16, 128, %s18, [#allocation4]
    $region5: #{tpu_custom_call.1} parent=1 // pred_fallthru
      _
    // Predicated region
    $region6: #{tpu_custom_call.1} parent=1 // pred_check
      _
    $region7: #{tpu_custom_call.1} parent=1 // pred_check_branch
      %22 = sbr.rel (0) target = $region9
    $region8: #{tpu_custom_call.1} parent=1 // pred_region
      _
    $region9: #{tpu_custom_call.1} parent=1 // pred_fallthru
      _
    // Predicated region
    $region10: #{tpu_custom_call.1} parent=1 // pred_check
      _
    $region11: #{tpu_custom_call.1} parent=1 // pred_check_branch
      %24 = sbr.rel (0) target = $region13
    $region12: #{tpu_custom_call.1} parent=1 // pred_region
      _
    $region13: #{tpu_custom_call.1} parent=1 // pred_fallthru
      _
    // Predicated region
    $region14: #{tpu_custom_call.1} parent=1 // pred_check
      _
    $region15: #{tpu_custom_call.1} parent=1 // pred_check_branch
      %26 = sbr.rel (0) target = $region17
    $region16: #{tpu_custom_call.1} parent=1 // pred_region
      %28 = dma.done [#allocation4], 128
    $region17: #{tpu_custom_call.1} parent=1 // pred_fallthru
      _
    %v29 = vld [vmem:[#allocation3] sm:$0xff]
    %v30 = vld [vmem:[%s1] sm:$0x1]
    %v32 = vperm.slane %v30, 0
    %v34 = vmul.f32 %v29, %v32
    %35 = vadd.xlane.f32.xlu0 %v34
    %v36 = vpop.xlane.xlu0 %35
    %s37 = sld [smem:[#allocation2]]
    %v38 = vstv %s37
    %v39 = vadd.f32 %v36, %v38
    %vm40 = vcmask 7168
    %41 = vst.msk [vmem:[%s3] sm:$0xff] %vm40, %v39
    // Predicated region
    $region18: #{tpu_custom_call.1} parent=1 // pred_check
      _
    $region19: #{tpu_custom_call.1} parent=1 // pred_check_branch
      %43 = sbr.rel (0) target = $region21
    $region20: #{tpu_custom_call.1} parent=1 // pred_region
      _
    $region21: #{tpu_custom_call.1} parent=1 // pred_fallthru
      _
    // Predicated region
    $region22: #{tpu_custom_call.1} parent=1 // pred_check
      _
    $region23: #{tpu_custom_call.1} parent=1 // pred_check_branch
      %45 = sbr.rel (0) target = $region25
    $region24: #{tpu_custom_call.1} parent=1 // pred_region
      _
    $region25: #{tpu_custom_call.1} parent=1 // pred_fallthru
      _
    %46 = vsyncpa [#allocation4], 1

</llo_original>
